<compile_context>
chip_gen: v7x
topology: tpu7x:2x2x1
jax: 0.10.0
libtpu: 0.0.40
codegen_flags: <defaults>
</compile_context>

<pallas_src>
import functools

import jax
import jax.numpy as jnp
from jax import lax
from jax.experimental import pallas as pl
from jax.experimental.pallas import tpu as pltpu


def tdbu_kernel(
    x_ref,            # (1, S, H)     f32
    w_all_ref,        # (H, 2A+2R)    bf16  fused MLP weight (pre-transposed)
    b_all_ref,        # (1, 2A+2R)    f32   fused MLP bias
    warc_m_ref,       # (A, A)        bf16  arc biaffine core   (scale pre-folded)
    warc_b_ref,       # (1, A)        f32   arc biaffine bias row (scale pre-folded)
    wrel_m_ref,       # (O, R, R)     bf16  rel biaffine core
    wrel_db_ref,      # (O, R, 1)     f32   rel dep-side bias column (j = R)
    wrel_hb_ref,      # (O, R)        bf16  rel head-side bias row   (i = R)
    wrel_c_ref,       # (O, 1)        f32   rel constant term        (i = j = R)
    s_arc_ref,        # (1, S, S)     f32
    s_rel_ref,        # (1, O, S, S)  f32
    *,
    mxu_dtype,
):
    S = x_ref.shape[1]
    A = warc_m_ref.shape[0]
    O, R = wrel_hb_ref.shape
    f32 = jnp.float32

    # ---- fused MLP: single (S,H)x(H,2A+2R) MXU matmul, f32 accumulation ------
    x = x_ref[0].astype(mxu_dtype)                               # (S, H)
    h = lax.dot_general(x, w_all_ref[...], (((1,), (0,)), ((), ())),
                        preferred_element_type=f32)
    h = h + b_all_ref[...]
    h = jnp.where(h > 0, h, 0.1 * h)          # LeakyReLU(0.1); dropout is identity in eval

    arc_d = h[:, :A].astype(mxu_dtype)                           # (S, A)
    arc_h = h[:, A:2 * A].astype(mxu_dtype)                      # (S, A)
    rel_d = h[:, 2 * A:2 * A + R].astype(mxu_dtype)              # (S, R)
    rel_h = h[:, 2 * A + R:].astype(mxu_dtype)                   # (S, R)

    # ---- arc biaffine (bias_x=True, bias_y=False, n_out=1) -------------------
    # t[x,:] = arc_d[x] @ W[:A] + W[A]  (bias row folded, 1/A**scale pre-folded)
    t = lax.dot_general(arc_d, warc_m_ref[...], (((1,), (0,)), ((), ())),
                        preferred_element_type=f32) + warc_b_ref[...]
    s_arc = lax.dot_general(t.astype(mxu_dtype), arc_h,
                            (((1,), (1,)), ((), ())),
                            preferred_element_type=f32)           # (S, S)
    s_arc_ref[0] = s_arc

    # ---- rel biaffine (bias_x=True, bias_y=True, n_out=O), batched over O ----
    # V[o,i,y] = sum_j Wm[o,i,j] * rel_h[y,j]  +  W[o,i,R]   (dep-side bias folded)
    rel_h_b = jnp.broadcast_to(rel_h[None], (O, S, R))
    v = lax.dot_general(wrel_m_ref[...], rel_h_b,
                        (((2,), (2,)), ((0,), (0,))),
                        preferred_element_type=f32)               # (O, R, S)
    v = v + wrel_db_ref[...]
    # s_core[o,x,y] = sum_i rel_d[x,i] * V[o,i,y]
    rel_d_b = jnp.broadcast_to(rel_d[None], (O, S, R))
    s_rel = lax.dot_general(rel_d_b, v.astype(mxu_dtype),
                            (((2,), (1,)), ((0,), (0,))),
                            preferred_element_type=f32)           # (O, S, S)
    # row[o,y] = sum_j W[o,R,j] * rel_h[y,j] + W[o,R,R]   (independent of x)
    row = lax.dot_general(wrel_hb_ref[...], rel_h,
                          (((1,), (1,)), ((), ())),
                          preferred_element_type=f32) + wrel_c_ref[...]   # (O, S)
    # single store of the whole (O,S,S) slab (no per-o masked partial stores)
    s_rel_ref[0] = s_rel + row[:, None, :]


def _pack_params(params, *, n_arc_mlp, n_rel_mlp, n_rels, scale, rel_scale, mxu_dtype):
    """Host-side repack: fuse MLP weights, split biaffine bias rows, fold scales."""
    A, R, O = n_arc_mlp, n_rel_mlp, n_rels
    f32 = jnp.float32

    # Fused MLP weight (pre-transposed to (H, 2A+2R) so the kernel needs no .T).
    w_all = jnp.concatenate(
        [params["wad"].T, params["wah"].T, params["wrd"].T, params["wrh"].T], axis=1)
    b_all = jnp.concatenate(
        [params["bad"], params["bah"], params["brd"], params["brh"]], axis=1)

    # Arc biaffine: fold bias row; pre-apply 1/n_arc_mlp**scale to the weight.
    warc = params["warc"] * (1.0 / (A ** scale))                  # (A+1, A)
    warc_m, warc_b = warc[:A, :], warc[A:A + 1, :]

    # Rel biaffine: split into core / dep-bias column / head-bias row / constant
    # so the kernel never concatenates ones onto the activations.
    wrel = params["wrel"] * (1.0 / (R ** rel_scale))              # (O, R+1, R+1)
    wrel_m = wrel[:, :R, :R]                                      # (O, R, R)
    wrel_db = wrel[:, :R, R:R + 1]                                # (O, R, 1)
    wrel_hb = wrel[:, R, :R]                                      # (O, R)
    wrel_c = wrel[:, R, R:R + 1]                                  # (O, 1)

    return (
        w_all.astype(mxu_dtype), b_all.astype(f32),
        warc_m.astype(mxu_dtype), warc_b.astype(f32),
        wrel_m.astype(mxu_dtype), wrel_db.astype(f32),
        wrel_hb.astype(mxu_dtype), wrel_c.astype(f32),
    )


def top_down_bottom_up(inputs, params, *, n_arc_mlp, n_rel_mlp, n_rels,
                       scale=0, rel_scale=0, mxu_dtype=jnp.bfloat16):
    """inputs: [B, S, H] float32. Returns (s_arc [B,S,S], s_rel [B,S,S,n_rels])."""
    B, S, H = inputs.shape
    A, R, O = n_arc_mlp, n_rel_mlp, n_rels

    packed = _pack_params(params, n_arc_mlp=A, n_rel_mlp=R, n_rels=O,
                          scale=scale, rel_scale=rel_scale, mxu_dtype=mxu_dtype)

    def full_spec(arr):
        nd = arr.ndim
        return pl.BlockSpec(arr.shape, lambda b, _nd=nd: (0,) * _nd)

    in_specs = [pl.BlockSpec((1, S, H), lambda b: (b, 0, 0))]     # per-batch tile
    in_specs += [full_spec(p) for p in packed]                    # weights stay resident

    out_specs = [
        pl.BlockSpec((1, S, S), lambda b: (b, 0, 0)),
        pl.BlockSpec((1, O, S, S), lambda b: (b, 0, 0, 0)),
    ]
    out_shape = (
        jax.ShapeDtypeStruct((B, S, S), jnp.float32),
        jax.ShapeDtypeStruct((B, O, S, S), jnp.float32),
    )

    kernel = functools.partial(tdbu_kernel, mxu_dtype=mxu_dtype)

    # TODO(synk): at production sizes (S>=512, n_rels>=32) add grid axes over
    # n_rels / query rows and raise vmem_limit_bytes so the per-batch s_rel
    # block fits v7x's 64 MiB VMEM; the toy shapes here fit trivially.
    s_arc, s_rel_bo = pl.pallas_call(
        kernel,
        out_shape=out_shape,
        grid_spec=pltpu.PrefetchScalarGridSpec(
            num_scalar_prefetch=0,
            grid=(B,),                    # B>=2 keeps both v7x TensorCores busy
            in_specs=in_specs,
            out_specs=out_specs,
        ),
        compiler_params=pltpu.CompilerParams(
            dimension_semantics=("parallel",),
        ),
    )(inputs, *packed)

    # permute(0, 2, 3, 1): [B, O, S, S] -> [B, S, S, O]   (layout glue only)
    s_rel = jnp.transpose(s_rel_bo, (0, 2, 3, 1))
    return s_arc, s_rel


def _reference(inputs, params, *, n_arc_mlp, scale):
    """Pure-JAX f32 reference of the PyTorch forward (eval mode)."""
    def mlp(x, w, b):
        y = jnp.einsum("bsh,oh->bso", x, w) + b
        return jnp.where(y > 0, y, 0.1 * y)

    arc_d = mlp(inputs, params["wad"], params["bad"])
    arc_h = mlp(inputs, params["wah"], params["bah"])
    rel_d = mlp(inputs, params["wrd"], params["brd"])
    rel_h = mlp(inputs, params["wrh"], params["brh"])

    ones = jnp.ones(arc_d.shape[:-1] + (1,), jnp.float32)
    arc_d1 = jnp.concatenate([arc_d, ones], axis=-1)
    s_arc = jnp.einsum("bxi,ij,byj->bxy", arc_d1, params["warc"], arc_h)
    s_arc = s_arc / (n_arc_mlp ** scale)

    rel_d1 = jnp.concatenate([rel_d, ones], axis=-1)
    rel_h1 = jnp.concatenate([rel_h, ones], axis=-1)
    s_rel = jnp.einsum("bxi,oij,byj->boxy", rel_d1, params["wrel"], rel_h1)
    s_rel = jnp.transpose(s_rel, (0, 2, 3, 1))
    return s_arc, s_rel


def make_params(key, *, n_hidden, n_arc_mlp, n_rel_mlp, n_rels):
    ks = jax.random.split(key, 10)
    H, A, R, O = n_hidden, n_arc_mlp, n_rel_mlp, n_rels
    init = lambda k, shape, s=0.1: (s * jax.random.normal(k, shape)).astype(jnp.float32)
    return {
        "wad": init(ks[0], (A, H)), "bad": init(ks[1], (1, A)),
        "wah": init(ks[2], (A, H)), "bah": init(ks[3], (1, A)),
        "wrd": init(ks[4], (R, H)), "brd": init(ks[5], (1, R)),
        "wrh": init(ks[6], (R, H)), "brh": init(ks[7], (1, R)),
        "warc": init(ks[8], (A + 1, A)),          # Biaffine(n_out=1, bias_x=True, bias_y=False), n_out squeezed
        "wrel": init(ks[9], (O, R + 1, R + 1)),   # Biaffine(n_out=n_rels, bias_x=True, bias_y=True)
    }


if __name__ == "__main__":
    # configs: n_encoder_hidden=32, n_arc_mlp=16, n_rel_mlp=12, n_rels=4, scale=0
    B, S, H = 2, 8, 32
    A, R, O = 16, 12, 4
    SCALE = 0

    key = jax.random.PRNGKey(0)
    k_x, k_p = jax.random.split(key)
    inputs = jax.random.normal(k_x, (B, S, H), dtype=jnp.float32)
    params = make_params(k_p, n_hidden=H, n_arc_mlp=A, n_rel_mlp=R, n_rels=O)

    s_arc, s_rel = top_down_bottom_up(
        inputs, params, n_arc_mlp=A, n_rel_mlp=R, n_rels=O, scale=SCALE
    )
    jax.block_until_ready((s_arc, s_rel))

    # correctness check against pure-JAX f32 reference (tolerance reflects bf16 MXU inputs)
    ref_arc, ref_rel = _reference(inputs, params, n_arc_mlp=A, scale=SCALE)
    assert s_arc.shape == (B, S, S) and s_rel.shape == (B, S, S, O)
    assert jnp.allclose(s_arc, ref_arc, atol=5e-2, rtol=5e-2)
    assert jnp.allclose(s_rel, ref_rel, atol=5e-2, rtol=5e-2)

    print("KERNEL_OK")
</pallas_src>

<mosaic_0001>
module attributes {stable_mosaic.version = 11 : i64} {
  func.func @tdbu_kernel(%arg0: i32, %arg1: memref<1x8x32xf32, #tpu.memory_space<vmem>>, %arg2: memref<32x56xbf16, #tpu.memory_space<vmem>>, %arg3: memref<1x56xf32, #tpu.memory_space<vmem>>, %arg4: memref<16x16xbf16, #tpu.memory_space<vmem>>, %arg5: memref<1x16xf32, #tpu.memory_space<vmem>>, %arg6: memref<4x12x12xbf16, #tpu.memory_space<vmem>>, %arg7: memref<4x12x1xf32, #tpu.memory_space<vmem>>, %arg8: memref<4x12xbf16, #tpu.memory_space<vmem>>, %arg9: memref<4x1xf32, #tpu.memory_space<vmem>>, %arg10: memref<1x8x8xf32, #tpu.memory_space<vmem>>, %arg11: memref<1x4x8x8xf32, #tpu.memory_space<vmem>>) attributes {dimension_semantics = [#tpu.dimension_semantics<parallel>], iteration_bounds = array<i64: 2>, scalar_prefetch = 0 : i64, scratch_operands = 0 : i64, tpu.core_type = #tpu.core_type<tc>, window_params = [{transform_indices = @transform_0, window_bounds = array<i64: 1, 8, 32>}, {pipeline_mode = #tpu.pipeline_mode<synchronous>, transform_indices = @transform_1, window_bounds = array<i64: 32, 56>}, {pipeline_mode = #tpu.pipeline_mode<synchronous>, transform_indices = @transform_2, window_bounds = array<i64: 1, 56>}, {pipeline_mode = #tpu.pipeline_mode<synchronous>, transform_indices = @transform_3, window_bounds = array<i64: 16, 16>}, {pipeline_mode = #tpu.pipeline_mode<synchronous>, transform_indices = @transform_4, window_bounds = array<i64: 1, 16>}, {pipeline_mode = #tpu.pipeline_mode<synchronous>, transform_indices = @transform_5, window_bounds = array<i64: 4, 12, 12>}, {pipeline_mode = #tpu.pipeline_mode<synchronous>, transform_indices = @transform_6, window_bounds = array<i64: 4, 12, 1>}, {pipeline_mode = #tpu.pipeline_mode<synchronous>, transform_indices = @transform_7, window_bounds = array<i64: 4, 12>}, {pipeline_mode = #tpu.pipeline_mode<synchronous>, transform_indices = @transform_8, window_bounds = array<i64: 4, 1>}, {transform_indices = @transform_9, window_bounds = array<i64: 1, 8, 8>}, {transform_indices = @transform_10, window_bounds = array<i64: 1, 4, 8, 8>}]} {
    %c0 = arith.constant 0 : index
    %c0_0 = arith.constant 0 : index
    %c0_1 = arith.constant 0 : index
    %0 = vector.load %arg1[%c0, %c0_0, %c0_1] : memref<1x8x32xf32, #tpu.memory_space<vmem>>, vector<1x8x32xf32>
    %1 = vector.shape_cast %0 : vector<1x8x32xf32> to vector<8x32xf32>
    %2 = arith.truncf %1 : vector<8x32xf32> to vector<8x32xbf16>
    %c0_2 = arith.constant 0 : index
    %c0_3 = arith.constant 0 : index
    %3 = vector.load %arg2[%c0_2, %c0_3] : memref<32x56xbf16, #tpu.memory_space<vmem>>, vector<32x56xbf16>
    %cst = arith.constant dense<0.000000e+00> : vector<8x56xf32>
    %4 = tpu.matmul %2, %3, %cst {dimension_numbers = #tpu.dot_dimension_numbers<[1], [0], [0], [1], [0, 0, 1, 1], [], []>} : vector<8x32xbf16>, vector<32x56xbf16>, vector<8x56xf32> -> vector<8x56xf32>
    %c0_4 = arith.constant 0 : index
    %c0_5 = arith.constant 0 : index
    %5 = vector.load %arg3[%c0_4, %c0_5] : memref<1x56xf32, #tpu.memory_space<vmem>>, vector<1x56xf32>
    %6 = vector.broadcast %5 : vector<1x56xf32> to vector<8x56xf32>
    %7 = arith.addf %4, %6 : vector<8x56xf32>
    %cst_6 = arith.constant 0.000000e+00 : f32
    %8 = vector.broadcast %cst_6 : f32 to vector<8x56xf32>
    %9 = arith.cmpf ogt, %7, %8 : vector<8x56xf32>
    %cst_7 = arith.constant 1.000000e-01 : f32
    %10 = vector.broadcast %cst_7 : f32 to vector<8x56xf32>
    %11 = arith.mulf %10, %7 : vector<8x56xf32>
    %12 = arith.select %9, %7, %11 : vector<8x56xi1>, vector<8x56xf32>
    %13 = vector.extract_strided_slice %12 {offsets = [0, 0], sizes = [8, 16], strides = [1, 1]} : vector<8x56xf32> to vector<8x16xf32>
    %14 = arith.truncf %13 : vector<8x16xf32> to vector<8x16xbf16>
    %15 = vector.extract_strided_slice %12 {offsets = [0, 16], sizes = [8, 16], strides = [1, 1]} : vector<8x56xf32> to vector<8x16xf32>
    %16 = arith.truncf %15 : vector<8x16xf32> to vector<8x16xbf16>
    %17 = vector.extract_strided_slice %12 {offsets = [0, 32], sizes = [8, 12], strides = [1, 1]} : vector<8x56xf32> to vector<8x12xf32>
    %18 = arith.truncf %17 : vector<8x12xf32> to vector<8x12xbf16>
    %19 = vector.extract_strided_slice %12 {offsets = [0, 44], sizes = [8, 12], strides = [1, 1]} : vector<8x56xf32> to vector<8x12xf32>
    %20 = arith.truncf %19 : vector<8x12xf32> to vector<8x12xbf16>
    %c0_8 = arith.constant 0 : index
    %c0_9 = arith.constant 0 : index
    %21 = vector.load %arg4[%c0_8, %c0_9] : memref<16x16xbf16, #tpu.memory_space<vmem>>, vector<16x16xbf16>
    %cst_10 = arith.constant dense<0.000000e+00> : vector<8x16xf32>
    %22 = tpu.matmul %14, %21, %cst_10 {dimension_numbers = #tpu.dot_dimension_numbers<[1], [0], [0], [1], [0, 0, 1, 1], [], []>} : vector<8x16xbf16>, vector<16x16xbf16>, vector<8x16xf32> -> vector<8x16xf32>
    %c0_11 = arith.constant 0 : index
    %c0_12 = arith.constant 0 : index
    %23 = vector.load %arg5[%c0_11, %c0_12] : memref<1x16xf32, #tpu.memory_space<vmem>>, vector<1x16xf32>
    %24 = vector.broadcast %23 : vector<1x16xf32> to vector<8x16xf32>
    %25 = arith.addf %22, %24 : vector<8x16xf32>
    %26 = arith.truncf %25 : vector<8x16xf32> to vector<8x16xbf16>
    %cst_13 = arith.constant dense<0.000000e+00> : vector<8x8xf32>
    %27 = tpu.matmul %26, %16, %cst_13 {dimension_numbers = #tpu.dot_dimension_numbers<[1], [1], [0], [0], [0, 0, 1, 0], [], []>} : vector<8x16xbf16>, vector<8x16xbf16>, vector<8x8xf32> -> vector<8x8xf32>
    %c0_14 = arith.constant 0 : index
    %c0_15 = arith.constant 0 : index
    %c0_16 = arith.constant 0 : index
    %28 = vector.load %arg10[%c0_14, %c0_15, %c0_16] : memref<1x8x8xf32, #tpu.memory_space<vmem>>, vector<1x8x8xf32>
    %29 = vector.shape_cast %28 : vector<1x8x8xf32> to vector<8x8xf32>
    %30 = vector.shape_cast %27 : vector<8x8xf32> to vector<1x8x8xf32>
    tpu.vector_store %arg10[%c0_14, %c0_15, %c0_16], %30 {strides = array<i32>} : memref<1x8x8xf32, #tpu.memory_space<vmem>>, vector<1x8x8xf32>,
    %31 = vector.shape_cast %20 : vector<8x12xbf16> to vector<1x8x12xbf16>
    %32 = vector.shape_cast %31 : vector<1x8x12xbf16> to vector<1x8x12xbf16>
    %33 = vector.broadcast %32 : vector<1x8x12xbf16> to vector<4x8x12xbf16>
    %c0_17 = arith.constant 0 : index
    %c0_18 = arith.constant 0 : index
    %c0_19 = arith.constant 0 : index
    %34 = vector.load %arg6[%c0_17, %c0_18, %c0_19] : memref<4x12x12xbf16, #tpu.memory_space<vmem>>, vector<4x12x12xbf16>
    %cst_20 = arith.constant dense<0.000000e+00> : vector<4x12x8xf32>
    %35 = tpu.matmul %34, %33, %cst_20 {dimension_numbers = #tpu.dot_dimension_numbers<[2], [2], [1], [1], [0, 0, 0, 1, 1, 1], [0], [0]>} : vector<4x12x12xbf16>, vector<4x8x12xbf16>, vector<4x12x8xf32> -> vector<4x12x8xf32>
    %c0_21 = arith.constant 0 : index
    %c0_22 = arith.constant 0 : index
    %c0_23 = arith.constant 0 : index
    %36 = vector.load %arg7[%c0_21, %c0_22, %c0_23] : memref<4x12x1xf32, #tpu.memory_space<vmem>>, vector<4x12x1xf32>
    %37 = vector.broadcast %36 : vector<4x12x1xf32> to vector<4x12x8xf32>
    %38 = arith.addf %35, %37 : vector<4x12x8xf32>
    %39 = vector.shape_cast %18 : vector<8x12xbf16> to vector<1x8x12xbf16>
    %40 = vector.shape_cast %39 : vector<1x8x12xbf16> to vector<1x8x12xbf16>
    %41 = vector.broadcast %40 : vector<1x8x12xbf16> to vector<4x8x12xbf16>
    %42 = arith.truncf %38 : vector<4x12x8xf32> to vector<4x12x8xbf16>
    %cst_24 = arith.constant dense<0.000000e+00> : vector<4x8x8xf32>
    %43 = tpu.matmul %41, %42, %cst_24 {dimension_numbers = #tpu.dot_dimension_numbers<[2], [1], [1], [2], [0, 0, 0, 1, 1, 2], [0], [0]>} : vector<4x8x12xbf16>, vector<4x12x8xbf16>, vector<4x8x8xf32> -> vector<4x8x8xf32>
    %c0_25 = arith.constant 0 : index
    %c0_26 = arith.constant 0 : index
    %44 = vector.load %arg8[%c0_25, %c0_26] : memref<4x12xbf16, #tpu.memory_space<vmem>>, vector<4x12xbf16>
    %cst_27 = arith.constant dense<0.000000e+00> : vector<4x8xf32>
    %45 = tpu.matmul %44, %20, %cst_27 {dimension_numbers = #tpu.dot_dimension_numbers<[1], [1], [0], [0], [0, 0, 1, 0], [], []>} : vector<4x12xbf16>, vector<8x12xbf16>, vector<4x8xf32> -> vector<4x8xf32>
    %c0_28 = arith.constant 0 : index
    %c0_29 = arith.constant 0 : index
    %46 = vector.load %arg9[%c0_28, %c0_29] : memref<4x1xf32, #tpu.memory_space<vmem>>, vector<4x1xf32>
    %47 = vector.broadcast %46 : vector<4x1xf32> to vector<4x8xf32>
    %48 = arith.addf %45, %47 : vector<4x8xf32>
    %49 = vector.shape_cast %48 : vector<4x8xf32> to vector<4x1x8xf32>
    %50 = vector.broadcast %49 : vector<4x1x8xf32> to vector<4x8x8xf32>
    %51 = arith.addf %43, %50 : vector<4x8x8xf32>
    %c0_30 = arith.constant 0 : index
    %c0_31 = arith.constant 0 : index
    %c0_32 = arith.constant 0 : index
    %c0_33 = arith.constant 0 : index
    %52 = vector.load %arg11[%c0_30, %c0_31, %c0_32, %c0_33] : memref<1x4x8x8xf32, #tpu.memory_space<vmem>>, vector<1x4x8x8xf32>
    %53 = vector.shape_cast %52 : vector<1x4x8x8xf32> to vector<4x8x8xf32>
    %54 = vector.shape_cast %51 : vector<4x8x8xf32> to vector<1x4x8x8xf32>
    tpu.vector_store %arg11[%c0_30, %c0_31, %c0_32, %c0_33], %54 {strides = array<i32>} : memref<1x4x8x8xf32, #tpu.memory_space<vmem>>, vector<1x4x8x8xf32>,
    return
  }
  func.func @transform_0(%arg0: i32) -> (i32, i32, i32) {
    %c0_i32 = arith.constant 0 : i32
    %c0_i32_0 = arith.constant 0 : i32
    %c0_i32_1 = arith.constant 0 : i32
    return %arg0, %c0_i32, %c0_i32_0 : i32, i32, i32
  }
  func.func @transform_1(%arg0: i32) -> (i32, i32) {
    %c0_i32 = arith.constant 0 : i32
    %c0_i32_0 = arith.constant 0 : i32
    %c0_i32_1 = arith.constant 0 : i32
    return %c0_i32, %c0_i32_0 : i32, i32
  }
  func.func @transform_2(%arg0: i32) -> (i32, i32) {
    %c0_i32 = arith.constant 0 : i32
    %c0_i32_0 = arith.constant 0 : i32
    %c0_i32_1 = arith.constant 0 : i32
    return %c0_i32, %c0_i32_0 : i32, i32
  }
  func.func @transform_3(%arg0: i32) -> (i32, i32) {
    %c0_i32 = arith.constant 0 : i32
    %c0_i32_0 = arith.constant 0 : i32
    %c0_i32_1 = arith.constant 0 : i32
    return %c0_i32, %c0_i32_0 : i32, i32
  }
  func.func @transform_4(%arg0: i32) -> (i32, i32) {
    %c0_i32 = arith.constant 0 : i32
    %c0_i32_0 = arith.constant 0 : i32
    %c0_i32_1 = arith.constant 0 : i32
    return %c0_i32, %c0_i32_0 : i32, i32
  }
  func.func @transform_5(%arg0: i32) -> (i32, i32, i32) {
    %c0_i32 = arith.constant 0 : i32
    %c0_i32_0 = arith.constant 0 : i32
    %c0_i32_1 = arith.constant 0 : i32
    %c0_i32_2 = arith.constant 0 : i32
    return %c0_i32, %c0_i32_0, %c0_i32_1 : i32, i32, i32
  }
  func.func @transform_6(%arg0: i32) -> (i32, i32, i32) {
    %c0_i32 = arith.constant 0 : i32
    %c0_i32_0 = arith.constant 0 : i32
    %c0_i32_1 = arith.constant 0 : i32
    %c0_i32_2 = arith.constant 0 : i32
    return %c0_i32, %c0_i32_0, %c0_i32_1 : i32, i32, i32
  }
  func.func @transform_7(%arg0: i32) -> (i32, i32) {
    %c0_i32 = arith.constant 0 : i32
    %c0_i32_0 = arith.constant 0 : i32
    %c0_i32_1 = arith.constant 0 : i32
    return %c0_i32, %c0_i32_0 : i32, i32
  }
  func.func @transform_8(%arg0: i32) -> (i32, i32) {
    %c0_i32 = arith.constant 0 : i32
    %c0_i32_0 = arith.constant 0 : i32
    %c0_i32_1 = arith.constant 0 : i32
    return %c0_i32, %c0_i32_0 : i32, i32
  }
  func.func @transform_9(%arg0: i32) -> (i32, i32, i32) {
    %c0_i32 = arith.constant 0 : i32
    %c0_i32_0 = arith.constant 0 : i32
    %c0_i32_1 = arith.constant 0 : i32
    return %arg0, %c0_i32, %c0_i32_0 : i32, i32, i32
  }
  func.func @transform_10(%arg0: i32) -> (i32, i32, i32, i32) {
    %c0_i32 = arith.constant 0 : i32
    %c0_i32_0 = arith.constant 0 : i32
    %c0_i32_1 = arith.constant 0 : i32
    %c0_i32_2 = arith.constant 0 : i32
    return %arg0, %c0_i32, %c0_i32_0, %c0_i32_1 : i32, i32, i32, i32
  }
}

</mosaic_0001>

<llo_original>
// kernel: tpu_custom_call.1
$region0: #{tpu_custom_call.1}
  #allocation0 [shape = 'u32[]', space=smem, size = 0x4, offset = 0x4, fixed_abs, tag = 'smem constant byte address 0x4 - core index']
  #allocation1 [shape = 'u32[144,128]{1,0:T(1,128)}', space=vmem, size = 0x12000, scoped, tag = 'internal scratch']
  %s0 = inlined_call_operand.vmem [shape: f32[2,8,32], index: 0, kind: input, shape index: {}]
  %s1 = inlined_call_operand.vmem [shape: bf16[32,56], index: 1, kind: input, shape index: {}]
  %s2 = inlined_call_operand.vmem [shape: f32[1,56], index: 2, kind: input, shape index: {}]
  %s3 = inlined_call_operand.vmem [shape: bf16[16,16], index: 3, kind: input, shape index: {}]
  %s4 = inlined_call_operand.vmem [shape: f32[1,16], index: 4, kind: input, shape index: {}]
  %s5 = inlined_call_operand.vmem [shape: bf16[4,12,12], index: 5, kind: input, shape index: {}]
  %s6 = inlined_call_operand.vmem [shape: f32[4,12,1], index: 6, kind: input, shape index: {}]
  %s7 = inlined_call_operand.vmem [shape: bf16[4,12], index: 7, kind: input, shape index: {}]
  %s8 = inlined_call_operand.vmem [shape: f32[4,1], index: 8, kind: input, shape index: {}]
  %s9 = inlined_call_operand.hbm [shape: f32[2,8,8], index: 9, kind: output, shape index: {0}]
  %s10 = inlined_call_operand.hbm [shape: f32[2,4,8,8], index: 10, kind: output, shape index: {1}]
  %11 = xla_tuple %s9, %s10
  %s12 = sld [smem:[#allocation0]]
  $region77: #{tpu_custom_call.1} parent=0
    _
  %s14 = ssub.s32 1, %s12
  %s15 = scalar_select 0, %s14, %s12
  $region1: #{tpu_custom_call.1} parent=0
    #allocation2 [shape = 'u8[8192]{0}', space=vmem, size = 0x2000, scoped, tag = 'output window, operand 0']
    #allocation3 [shape = 's32[2]{0}', space=sflag, size = 0x8, scoped, tag = 'scoped memory for tpu_custom_call.1']
    #allocation4 [shape = 'u8[32768]{0}', space=vmem, size = 0x8000, scoped, tag = 'output window, operand 1']
    #allocation5 [shape = 's32[2]{0}', space=sflag, size = 0x8, scoped, tag = 'scoped memory for tpu_custom_call.1']
    %16 = vsyncpa [#allocation3], 0
    %s17 = scalar_lea.sflag [#allocation3], 1
    %18 = vsyncpa %s17, 0
    %19 = vsyncpa [#allocation5], 0
    %s20 = scalar_lea.sflag [#allocation5], 1
    %21 = vsyncpa %s20, 0
    loop: start=0, step=1, limit=4
    $region2: #{tpu_custom_call.1} parent=1 // loop_pre_header
      _
    $region3: #{tpu_custom_call.1} parent=1 // loop_header
      %s23 = sphi 0, %s27
      %p24 = scmp.ge.s32.totalorder %s23, 4
      %s33 = sphi 0, %s35
      %s36 = sphi 0, %s33
      %s37 = sphi 0, %s36
      %s53 = sphi 0, %s37
      %s57 = sphi 0, %s57
      %s59 = sphi 0, %s57
      %s60 = sphi 0, %s59
      %s74 = sphi 0, %s60
      %s78 = sphi 0, %s78
      %s80 = sphi 0, %s78
      %s81 = sphi 0, %s80
      %s95 = sphi 0, %s81
      %s99 = sphi 0, %s99
      %s101 = sphi 0, %s99
      %s102 = sphi 0, %s101
      %s116 = sphi 0, %s102
      %s120 = sphi 0, %s120
      %s122 = sphi 0, %s120
      %s123 = sphi 0, %s122
      %s137 = sphi 0, %s123
      %s141 = sphi 0, %s141
      %s143 = sphi 0, %s141
      %s144 = sphi 0, %s143
      %s158 = sphi 0, %s144
      %s162 = sphi 0, %s162
      %s164 = sphi 0, %s162
      %s165 = sphi 0, %s164
      %s179 = sphi 0, %s165
      %s183 = sphi 0, %s183
      %s185 = sphi 0, %s183
      %s186 = sphi 0, %s185
      %s200 = sphi 0, %s186
      %s204 = sphi 0, %s204
      %s206 = sphi 0, %s204
      %s207 = sphi 0, %s206
      %s221 = sphi 0, %s207
      %s227 = sphi 0, %s229
      %s230 = sphi 0, %s227
      %s231 = sphi 0, %s230
      %s247 = sphi 0, %s231
      %s253 = sphi 0, %s255
      %s256 = sphi 0, %s253
      %s257 = sphi 0, %s256
      %s273 = sphi 0, %s257
    $region4: #{tpu_custom_call.1} parent=1 // loop_header_branch
      %26 = sbr.rel (%p24) target = $region8
    $region5: #{tpu_custom_call.1} parent=1 // loop_body
      %s28 = ssub.s32 %s23, 1
      %s29 = ssub.s32 %s23, 2
      %s30 = sadd.s32 %s23, 1
      %s31 = ssub.s32 %s23, %s30
      %p32 = scmp.eq.s32.totalorder %s31, 0
      %s34 = sadd.s32 %s33, 1
      %s35 = scalar_select %p32, %s33, %s34
      %p38 = pneg %p32
      %p39 = scmp.eq.s32.totalorder %s23, 1
      %p40 = por %p38, %p39
      %p41 = scmp.ne.s32.totalorder %s33, %s36
      %p42 = scmp.eq.s32.totalorder %s23, 0
      %p43 = por %p41, %p42
      %p44 = scmp.ne.s32.totalorder %s33, %s36
      %p45 = scmp.eq.s32.totalorder %s28, 1
      %p46 = por %p44, %p45
      %p47 = scmp.ne.s32.totalorder %s36, %s37
      %p48 = scmp.eq.s32.totalorder %s28, 0
      %p49 = por %p47, %p48
      %p50 = scmp.ne.s32.totalorder %s36, %s37
      %p51 = scmp.eq.s32.totalorder %s29, 1
      %p52 = por %p50, %p51
      %p54 = scmp.ne.s32.totalorder %s37, %s53
      %p55 = scmp.eq.s32.totalorder %s29, 0
      %p56 = por %p54, %p55
      %s58 = sadd.s32 %s57, 1
      %p61 = scmp.eq.s32.totalorder %s23, 1
      %p62 = scmp.ne.s32.totalorder %s57, %s59
      %p63 = scmp.eq.s32.totalorder %s23, 0
      %p64 = por %p62, %p63
      %p65 = scmp.ne.s32.totalorder %s57, %s59
      %p66 = scmp.eq.s32.totalorder %s28, 1
      %p67 = por %p65, %p66
      %p68 = scmp.ne.s32.totalorder %s59, %s60
      %p69 = scmp.eq.s32.totalorder %s28, 0
      %p70 = por %p68, %p69
      %p71 = scmp.ne.s32.totalorder %s59, %s60
      %p72 = scmp.eq.s32.totalorder %s29, 1
      %p73 = por %p71, %p72
      %p75 = scmp.ne.s32.totalorder %s60, %s74
      %p76 = scmp.eq.s32.totalorder %s29, 0
      %p77 = por %p75, %p76
      %s79 = sadd.s32 %s78, 1
      %p82 = scmp.eq.s32.totalorder %s23, 1
      %p83 = scmp.ne.s32.totalorder %s78, %s80
      %p84 = scmp.eq.s32.totalorder %s23, 0
      %p85 = por %p83, %p84
      %p86 = scmp.ne.s32.totalorder %s78, %s80
      %p87 = scmp.eq.s32.totalorder %s28, 1
      %p88 = por %p86, %p87
      %p89 = scmp.ne.s32.totalorder %s80, %s81
      %p90 = scmp.eq.s32.totalorder %s28, 0
      %p91 = por %p89, %p90
      %p92 = scmp.ne.s32.totalorder %s80, %s81
      %p93 = scmp.eq.s32.totalorder %s29, 1
      %p94 = por %p92, %p93
      %p96 = scmp.ne.s32.totalorder %s81, %s95
      %p97 = scmp.eq.s32.totalorder %s29, 0
      %p98 = por %p96, %p97
      %s100 = sadd.s32 %s99, 1
      %p103 = scmp.eq.s32.totalorder %s23, 1
      %p104 = scmp.ne.s32.totalorder %s99, %s101
      %p105 = scmp.eq.s32.totalorder %s23, 0
      %p106 = por %p104, %p105
      %p107 = scmp.ne.s32.totalorder %s99, %s101
      %p108 = scmp.eq.s32.totalorder %s28, 1
      %p109 = por %p107, %p108
      %p110 = scmp.ne.s32.totalorder %s101, %s102
      %p111 = scmp.eq.s32.totalorder %s28, 0
      %p112 = por %p110, %p111
      %p113 = scmp.ne.s32.totalorder %s101, %s102
      %p114 = scmp.eq.s32.totalorder %s29, 1
      %p115 = por %p113, %p114
      %p117 = scmp.ne.s32.totalorder %s102, %s116
      %p118 = scmp.eq.s32.totalorder %s29, 0
      %p119 = por %p117, %p118
      %s121 = sadd.s32 %s120, 1
      %p124 = scmp.eq.s32.totalorder %s23, 1
      %p125 = scmp.ne.s32.totalorder %s120, %s122
      %p126 = scmp.eq.s32.totalorder %s23, 0
      %p127 = por %p125, %p126
      %p128 = scmp.ne.s32.totalorder %s120, %s122
      %p129 = scmp.eq.s32.totalorder %s28, 1
      %p130 = por %p128, %p129
      %p131 = scmp.ne.s32.totalorder %s122, %s123
      %p132 = scmp.eq.s32.totalorder %s28, 0
      %p133 = por %p131, %p132
      %p134 = scmp.ne.s32.totalorder %s122, %s123
      %p135 = scmp.eq.s32.totalorder %s29, 1
      %p136 = por %p134, %p135
      %p138 = scmp.ne.s32.totalorder %s123, %s137
      %p139 = scmp.eq.s32.totalorder %s29, 0
      %p140 = por %p138, %p139
      %s142 = sadd.s32 %s141, 1
      %p145 = scmp.eq.s32.totalorder %s23, 1
      %p146 = scmp.ne.s32.totalorder %s141, %s143
      %p147 = scmp.eq.s32.totalorder %s23, 0
      %p148 = por %p146, %p147
      %p149 = scmp.ne.s32.totalorder %s141, %s143
      %p150 = scmp.eq.s32.totalorder %s28, 1
      %p151 = por %p149, %p150
      %p152 = scmp.ne.s32.totalorder %s143, %s144
      %p153 = scmp.eq.s32.totalorder %s28, 0
      %p154 = por %p152, %p153
      %p155 = scmp.ne.s32.totalorder %s143, %s144
      %p156 = scmp.eq.s32.totalorder %s29, 1
      %p157 = por %p155, %p156
      %p159 = scmp.ne.s32.totalorder %s144, %s158
      %p160 = scmp.eq.s32.totalorder %s29, 0
      %p161 = por %p159, %p160
      %s163 = sadd.s32 %s162, 1
      %p166 = scmp.eq.s32.totalorder %s23, 1
      %p167 = scmp.ne.s32.totalorder %s162, %s164
      %p168 = scmp.eq.s32.totalorder %s23, 0
      %p169 = por %p167, %p168
      %p170 = scmp.ne.s32.totalorder %s162, %s164
      %p171 = scmp.eq.s32.totalorder %s28, 1
      %p172 = por %p170, %p171
      %p173 = scmp.ne.s32.totalorder %s164, %s165
      %p174 = scmp.eq.s32.totalorder %s28, 0
      %p175 = por %p173, %p174
      %p176 = scmp.ne.s32.totalorder %s164, %s165
      %p177 = scmp.eq.s32.totalorder %s29, 1
      %p178 = por %p176, %p177
      %p180 = scmp.ne.s32.totalorder %s165, %s179
      %p181 = scmp.eq.s32.totalorder %s29, 0
      %p182 = por %p180, %p181
      %s184 = sadd.s32 %s183, 1
      %p187 = scmp.eq.s32.totalorder %s23, 1
      %p188 = scmp.ne.s32.totalorder %s183, %s185
      %p189 = scmp.eq.s32.totalorder %s23, 0
      %p190 = por %p188, %p189
      %p191 = scmp.ne.s32.totalorder %s183, %s185
      %p192 = scmp.eq.s32.totalorder %s28, 1
      %p193 = por %p191, %p192
      %p194 = scmp.ne.s32.totalorder %s185, %s186
      %p195 = scmp.eq.s32.totalorder %s28, 0
      %p196 = por %p194, %p195
      %p197 = scmp.ne.s32.totalorder %s185, %s186
      %p198 = scmp.eq.s32.totalorder %s29, 1
      %p199 = por %p197, %p198
      %p201 = scmp.ne.s32.totalorder %s186, %s200
      %p202 = scmp.eq.s32.totalorder %s29, 0
      %p203 = por %p201, %p202
      %s205 = sadd.s32 %s204, 1
      %p208 = scmp.eq.s32.totalorder %s23, 1
      %p209 = scmp.ne.s32.totalorder %s204, %s206
      %p210 = scmp.eq.s32.totalorder %s23, 0
      %p211 = por %p209, %p210
      %p212 = scmp.ne.s32.totalorder %s204, %s206
      %p213 = scmp.eq.s32.totalorder %s28, 1
      %p214 = por %p212, %p213
      %p215 = scmp.ne.s32.totalorder %s206, %s207
      %p216 = scmp.eq.s32.totalorder %s28, 0
      %p217 = por %p215, %p216
      %p218 = scmp.ne.s32.totalorder %s206, %s207
      %p219 = scmp.eq.s32.totalorder %s29, 1
      %p220 = por %p218, %p219
      %p222 = scmp.ne.s32.totalorder %s207, %s221
      %p223 = scmp.eq.s32.totalorder %s29, 0
      %p224 = por %p222, %p223
      %s225 = ssub.s32 %s23, %s30
      %p226 = scmp.eq.s32.totalorder %s225, 0
      %s228 = sadd.s32 %s227, 1
      %s229 = scalar_select %p226, %s227, %s228
      %p232 = pneg %p226
      %p233 = scmp.eq.s32.totalorder %s23, 1
      %p234 = por %p232, %p233
      %p235 = scmp.ne.s32.totalorder %s227, %s230
      %p236 = scmp.eq.s32.totalorder %s23, 0
      %p237 = por %p235, %p236
      %p238 = scmp.ne.s32.totalorder %s227, %s230
      %p239 = scmp.eq.s32.totalorder %s28, 1
      %p240 = por %p238, %p239
      %p241 = scmp.ne.s32.totalorder %s230, %s231
      %p242 = scmp.eq.s32.totalorder %s28, 0
      %p243 = por %p241, %p242
      %p244 = scmp.ne.s32.totalorder %s230, %s231
      %p245 = scmp.eq.s32.totalorder %s29, 1
      %p246 = por %p244, %p245
      %p248 = scmp.ne.s32.totalorder %s231, %s247
      %p249 = scmp.eq.s32.totalorder %s29, 0
      %p250 = por %p248, %p249
      %s251 = ssub.s32 %s23, %s30
      %p252 = scmp.eq.s32.totalorder %s251, 0
      %s254 = sadd.s32 %s253, 1
      %s255 = scalar_select %p252, %s253, %s254
      %p258 = pneg %p252
      %p259 = scmp.eq.s32.totalorder %s23, 1
      %p260 = por %p258, %p259
      %p261 = scmp.ne.s32.totalorder %s253, %s256
      %p262 = scmp.eq.s32.totalorder %s23, 0
      %p263 = por %p261, %p262
      %p264 = scmp.ne.s32.totalorder %s253, %s256
      %p265 = scmp.eq.s32.totalorder %s28, 1
      %p266 = por %p264, %p265
      %p267 = scmp.ne.s32.totalorder %s256, %s257
      %p268 = scmp.eq.s32.totalorder %s28, 0
      %p269 = por %p267, %p268
      %p270 = scmp.ne.s32.totalorder %s256, %s257
      %p271 = scmp.eq.s32.totalorder %s29, 1
      %p272 = por %p270, %p271
      %p274 = scmp.ne.s32.totalorder %s257, %s273
      %p275 = scmp.eq.s32.totalorder %s29, 0
      %p276 = por %p274, %p275
      %p277 = scmp.le.s32.totalorder 1, %s23
      %p278 = scmp.lt.s32.totalorder %s23, 3
      %p279 = pnand %p277, %p278
      %p280 = pneg %p279
      // Predicated region
      $region9: #{tpu_custom_call.1} parent=5 // pred_check
        _
      $region10: #{tpu_custom_call.1} parent=5 // pred_check_branch
        %282 = sbr.rel (%p279) target = $region12
      $region11: #{tpu_custom_call.1} parent=5 // pred_region
        %s283 = ssub.s32 %s23, 1
        // Predicated region
        $region13: #{tpu_custom_call.1} parent=11 // pred_check
          %p284 = pneg %p70
        $region14: #{tpu_custom_call.1} parent=11 // pred_check_branch
          %286 = sbr.rel (%p284) target = $region16
        $region15: #{tpu_custom_call.1} parent=11 // pred_region
          _
        $region16: #{tpu_custom_call.1} parent=11 // pred_fallthru
          _
        // Predicated region
        $region17: #{tpu_custom_call.1} parent=11 // pred_check
          %p287 = pneg %p91
        $region18: #{tpu_custom_call.1} parent=11 // pred_check_branch
          %289 = sbr.rel (%p287) target = $region20
        $region19: #{tpu_custom_call.1} parent=11 // pred_region
          _
        $region20: #{tpu_custom_call.1} parent=11 // pred_fallthru
          _
        // Predicated region
        $region21: #{tpu_custom_call.1} parent=11 // pred_check
          %p290 = pneg %p112
        $region22: #{tpu_custom_call.1} parent=11 // pred_check_branch
          %292 = sbr.rel (%p290) target = $region24
        $region23: #{tpu_custom_call.1} parent=11 // pred_region
          _
        $region24: #{tpu_custom_call.1} parent=11 // pred_fallthru
          _
        // Predicated region
        $region25: #{tpu_custom_call.1} parent=11 // pred_check
          %p293 = pneg %p133
        $region26: #{tpu_custom_call.1} parent=11 // pred_check_branch
          %295 = sbr.rel (%p293) target = $region28
        $region27: #{tpu_custom_call.1} parent=11 // pred_region
          _
        $region28: #{tpu_custom_call.1} parent=11 // pred_fallthru
          _
        // Predicated region
        $region29: #{tpu_custom_call.1} parent=11 // pred_check
          %p296 = pneg %p154
        $region30: #{tpu_custom_call.1} parent=11 // pred_check_branch
          %298 = sbr.rel (%p296) target = $region32
        $region31: #{tpu_custom_call.1} parent=11 // pred_region
          _
        $region32: #{tpu_custom_call.1} parent=11 // pred_fallthru
          _
        // Predicated region
        $region33: #{tpu_custom_call.1} parent=11 // pred_check
          %p299 = pneg %p175
        $region34: #{tpu_custom_call.1} parent=11 // pred_check_branch
          %301 = sbr.rel (%p299) target = $region36
        $region35: #{tpu_custom_call.1} parent=11 // pred_region
          _
        $region36: #{tpu_custom_call.1} parent=11 // pred_fallthru
          _
        // Predicated region
        $region37: #{tpu_custom_call.1} parent=11 // pred_check
          %p302 = pneg %p196
        $region38: #{tpu_custom_call.1} parent=11 // pred_check_branch
          %304 = sbr.rel (%p302) target = $region40
        $region39: #{tpu_custom_call.1} parent=11 // pred_region
          _
        $region40: #{tpu_custom_call.1} parent=11 // pred_fallthru
          _
        // Predicated region
        $region41: #{tpu_custom_call.1} parent=11 // pred_check
          %p305 = pneg %p217
        $region42: #{tpu_custom_call.1} parent=11 // pred_check_branch
          %307 = sbr.rel (%p305) target = $region44
        $region43: #{tpu_custom_call.1} parent=11 // pred_region
          _
        $region44: #{tpu_custom_call.1} parent=11 // pred_fallthru
          _
      $region12: #{tpu_custom_call.1} parent=5 // pred_fallthru
        _
      %p308 = scmp.lt.s32.totalorder %s23, 2
      // Predicated region
      $region45: #{tpu_custom_call.1} parent=5 // pred_check
        %p309 = pneg %p308
      $region46: #{tpu_custom_call.1} parent=5 // pred_check_branch
        %311 = sbr.rel (%p309) target = $region48
      $region47: #{tpu_custom_call.1} parent=5 // pred_region
        // Predicated region
        $region49: #{tpu_custom_call.1} parent=47 // pred_check
          %p312 = pneg %p43
        $region50: #{tpu_custom_call.1} parent=47 // pred_check_branch
          %314 = sbr.rel (%p312) target = $region52
        $region51: #{tpu_custom_call.1} parent=47 // pred_region
          %p315 = scmp.lt.s32.totalorder %s23, 1
          %s316 = scalar_select %p315, %s23, 1
          %s317 = smul.addr %s316, 8
          %s318 = scalar_lea.vmem %s0, %s317
        $region52: #{tpu_custom_call.1} parent=47 // pred_fallthru
          _
      $region48: #{tpu_custom_call.1} parent=5 // pred_fallthru
        _
      %p319 = scmp.le.s32.totalorder 1, %s23
      %p320 = scmp.lt.s32.totalorder %s23, 3
      %p321 = pnand %p319, %p320
      %p322 = pneg %p321
      // Predicated region
      $region53: #{tpu_custom_call.1} parent=5 // pred_check
        _
      $region54: #{tpu_custom_call.1} parent=5 // pred_check_branch
        %324 = sbr.rel (%p321) target = $region56
      $region55: #{tpu_custom_call.1} parent=5 // pred_region
        %s325 = ssub.s32 %s23, 1
        %p326 = scmp.lt.s32.totalorder %s28, 1
        %s327 = scalar_select %p326, %s28, 1
        %s328 = smul.addr %s327, 8
        %s329 = scalar_lea.vmem %s0, %s328
        %p330 = pneg %p49
        %p331 = pneg %p46
        %p332 = pneg %p70
        %p333 = pneg %p67
        %p334 = pneg %p91
        %p335 = pneg %p88
        %p336 = pneg %p112
        %p337 = pneg %p109
        %p338 = pneg %p133
        %p339 = pneg %p130
        %p340 = pneg %p154
        %p341 = pneg %p151
        %p342 = pneg %p175
        %p343 = pneg %p172
        %p344 = pneg %p196
        %p345 = pneg %p193
        %p346 = pneg %p217
        %p347 = pneg %p214
        %p348 = pneg %p243
        %p349 = pneg %p240
        %s350 = sand.u32 %s230, 1
        %s351 = scalar_lea.sflag [#allocation3], %s350
        %s352 = sand.u32 %s230, 1
        %s353 = smul.addr %s352, 8
        %s354 = scalar_lea.vmem [#allocation2], %s353
        %p355 = pneg %p269
        %p356 = pneg %p266
        %s357 = sand.u32 %s256, 1
        %s358 = scalar_lea.sflag [#allocation5], %s357
        %s359 = sand.u32 %s256, 1
        %s360 = smul.addr %s359, 32
        %s361 = scalar_lea.vmem [#allocation4], %s360
        %p362 = scmp.lt.s32.totalorder %s28, 1
        %s363 = scalar_select %p362, %s28, 1
        %s364 = smul.addr %s363, 8
        %s365 = scalar_lea.vmem %s0, %s364
        %v367 = vld [vmem:[%s365] sm:$0xff]
        %v368 = vpack.c.bf16 %v367, %v367
        %v369 = vld [vmem:[%s1] sm:$0xf]
        %v370 = vld [vmem:[%s1 + $0x4] sm:$0xf]
        %v371 = vld [vmem:[%s1 + $0x8] sm:$0xf]
        %v372 = vld [vmem:[%s1 + $0xc] sm:$0xf]
        %v373 = vld [vmem:[%s2] sm:$0x1]
        %v375 = vlaneseq
        %v376 = vshrl.u32 %v375, 7
        %v377 = vsub.s32 0, %v376
        %v378 = vrot.slane %v373, %v377
        %v384 = vunpack.c.l.b16 %v369
        %v385 = vunpack.c.l.b16 %v370
        %v386 = vunpack.c.l.b16 %v371
        %v387 = vunpack.c.l.b16 %v372
        %v388 = vpack.c.b16 %v385, %v384
        %v389 = vpack.c.b16 %v387, %v386
        %vm392 = vcmask 261120
        %v394 = vsel %vm392, %v368, 0
        %396 = vmatprep.subr.bf16.mxu0 0
        %397 = vmatpush1.bf16.msra.mxu0 %v388
        %398 = vmatprep.subr.bf16.mxu0 0
        %399 = vmatpush1.bf16.msra.mxu0 %v389
        %400 = vmatprep.subr.bf16.mxu0 0
        %401 = vmatpush1.bf16.msra.mxu0 0
        %402 = vmatprep.subr.bf16.mxu0 0
        %403 = vmatpush1.bf16.msra.mxu0 0
        %404 = vmatprep.subr.bf16.mxu0 0
        %405 = vmatpush1.bf16.msra.mxu0 0
        %406 = vmatprep.subr.bf16.mxu0 0
        %407 = vmatpush1.bf16.msra.mxu0 0
        %408 = vmatprep.subr.bf16.mxu0 0
        %409 = vmatpush1.bf16.msra.mxu0 0
        %410 = vmatprep.subr.bf16.mxu0 0
        %411 = vmatpush1.bf16.msra.mxu0 0
        %412 = vmatprep.subr.bf16.mxu0 0
        %413 = vmatpush1.bf16.msra.mxu0 0
        %414 = vmatprep.subr.bf16.mxu0 0
        %415 = vmatpush1.bf16.msra.mxu0 0
        %416 = vmatprep.subr.bf16.mxu0 0
        %417 = vmatpush1.bf16.msra.mxu0 0
        %418 = vmatprep.subr.bf16.mxu0 0
        %419 = vmatpush1.bf16.msra.mxu0 0
        %420 = vmatprep.subr.bf16.mxu0 0
        %421 = vmatpush1.bf16.msra.mxu0 0
        %422 = vmatprep.subr.bf16.mxu0 0
        %423 = vmatpush1.bf16.msra.mxu0 0
        %424 = vmatprep.subr.bf16.mxu0 0
        %425 = vmatpush1.bf16.msra.mxu0 0
        %426 = vmatprep.subr.bf16.mxu0 0
        %427 = vmatpush1.bf16.msra.mxu0 0
        %428 = vmatprep.mubr.bf16.mxu0 0
        %429 = vmatmul.mubr.bf16.gmra.mrb[0].mxu0 %v394
        %v430 = vpop.f32.mrb[0].mxu0
        %v431 = vadd.f32 %v378, %v430
        %v432 = vpop.f32.mrb[0].mxu0
        %v433 = vpop.f32.mrb[0].mxu0
        %v434 = vpop.f32.mrb[0].mxu0
        %435 = vdwg.mxu0
        %vm436 = vcmp.gt.f32.partialorder %v431, 0.0
        %v437 = vmul.f32 %v431, 0.1
        %v438 = vsel %vm436, %v431, %v437
        %v439 = vpack.c.bf16 %v438, %v438
        %v440 = vld [vmem:[%s3] sm:$0xf]
        %v441 = vld [vmem:[%s3 + $0x4] sm:$0xf]
        %v442 = vld [vmem:[%s4] sm:$0x1]
        %v444 = vlaneseq
        %v445 = vshrl.u32 %v444, 7
        %v446 = vsub.s32 0, %v445
        %v447 = vrot.slane %v442, %v446
        %v451 = vunpack.c.l.b16 %v440
        %v452 = vunpack.c.l.b16 %v441
        %v453 = vpack.c.b16 %v452, %v451
        %vm455 = vcmask 130048
        %v457 = vsel %vm455, %v439, 0
        %459 = vmatprep.subr.bf16.mxu0 0
        %460 = vmatpush1.bf16.msra.mxu0 %v453
        %461 = vmatprep.subr.bf16.mxu0 0
        %462 = vmatpush1.bf16.msra.mxu0 0
        %463 = vmatprep.subr.bf16.mxu0 0
        %464 = vmatpush1.bf16.msra.mxu0 0
        %465 = vmatprep.subr.bf16.mxu0 0
        %466 = vmatpush1.bf16.msra.mxu0 0
        %467 = vmatprep.subr.bf16.mxu0 0
        %468 = vmatpush1.bf16.msra.mxu0 0
        %469 = vmatprep.subr.bf16.mxu0 0
        %470 = vmatpush1.bf16.msra.mxu0 0
        %471 = vmatprep.subr.bf16.mxu0 0
        %472 = vmatpush1.bf16.msra.mxu0 0
        %473 = vmatprep.subr.bf16.mxu0 0
        %474 = vmatpush1.bf16.msra.mxu0 0
        %475 = vmatprep.subr.bf16.mxu0 0
        %476 = vmatpush1.bf16.msra.mxu0 0
        %477 = vmatprep.subr.bf16.mxu0 0
        %478 = vmatpush1.bf16.msra.mxu0 0
        %479 = vmatprep.subr.bf16.mxu0 0
        %480 = vmatpush1.bf16.msra.mxu0 0
        %481 = vmatprep.subr.bf16.mxu0 0
        %482 = vmatpush1.bf16.msra.mxu0 0
        %483 = vmatprep.subr.bf16.mxu0 0
        %484 = vmatpush1.bf16.msra.mxu0 0
        %485 = vmatprep.subr.bf16.mxu0 0
        %486 = vmatpush1.bf16.msra.mxu0 0
        %487 = vmatprep.subr.bf16.mxu0 0
        %488 = vmatpush1.bf16.msra.mxu0 0
        %489 = vmatprep.subr.bf16.mxu0 0
        %490 = vmatpush1.bf16.msra.mxu0 0
        %491 = vmatprep.mubr.bf16.mxu0 0
        %492 = vmatmul.mubr.bf16.gmra.mrb[0].mxu0 %v457
        %v493 = vpop.f32.mrb[0].mxu0
        %v494 = vadd.f32 %v447, %v493
        %v495 = vpop.f32.mrb[0].mxu0
        %v496 = vpop.f32.mrb[0].mxu0
        %v497 = vpop.f32.mrb[0].mxu0
        %498 = vdwg.mxu0
        %v499 = vpack.c.bf16 %v494, %v494
        %501 = vrot.lane.b32.xlu0 %v439, 112
        %v502 = vpop.permute.xlu0 %501
        %v504 = vsel %vm455, %v499, 0
        %v507 = vsel %vm455, %v502, 0
        %509 = vmatprep.subr.bf16.mxu0 0
        %510 = vmatpush1.bf16.xpose.msra.mxu0 %v507
        %511 = vmatprep.subr.bf16.mxu0 0
        %512 = vmatpush1.bf16.xpose.msra.mxu0 0
        %513 = vmatprep.subr.bf16.mxu0 0
        %514 = vmatpush1.bf16.xpose.msra.mxu0 0
        %515 = vmatprep.subr.bf16.mxu0 0
        %516 = vmatpush1.bf16.xpose.msra.mxu0 0
        %517 = vmatprep.subr.bf16.mxu0 0
        %518 = vmatpush1.bf16.xpose.msra.mxu0 0
        %519 = vmatprep.subr.bf16.mxu0 0
        %520 = vmatpush1.bf16.xpose.msra.mxu0 0
        %521 = vmatprep.subr.bf16.mxu0 0
        %522 = vmatpush1.bf16.xpose.msra.mxu0 0
        %523 = vmatprep.subr.bf16.mxu0 0
        %524 = vmatpush1.bf16.xpose.msra.mxu0 0
        %525 = vmatprep.subr.bf16.mxu0 0
        %526 = vmatpush1.bf16.xpose.msra.mxu0 0
        %527 = vmatprep.subr.bf16.mxu0 0
        %528 = vmatpush1.bf16.xpose.msra.mxu0 0
        %529 = vmatprep.subr.bf16.mxu0 0
        %530 = vmatpush1.bf16.xpose.msra.mxu0 0
        %531 = vmatprep.subr.bf16.mxu0 0
        %532 = vmatpush1.bf16.xpose.msra.mxu0 0
        %533 = vmatprep.subr.bf16.mxu0 0
        %534 = vmatpush1.bf16.xpose.msra.mxu0 0
        %535 = vmatprep.subr.bf16.mxu0 0
        %536 = vmatpush1.bf16.xpose.msra.mxu0 0
        %537 = vmatprep.subr.bf16.mxu0 0
        %538 = vmatpush1.bf16.xpose.msra.mxu0 0
        %539 = vmatprep.subr.bf16.mxu0 0
        %540 = vmatpush1.bf16.xpose.msra.mxu0 0
        %541 = vmatprep.mubr.bf16.mxu0 0
        %542 = vmatmul.mubr.bf16.gmra.mrb[0].mxu0 %v504
        %v543 = vpop.f32.mrb[0].mxu0
        %v544 = vadd.f32 0.0, %v543
        %v545 = vpop.f32.mrb[0].mxu0
        %v546 = vpop.f32.mrb[0].mxu0
        %v547 = vpop.f32.mrb[0].mxu0
        %548 = vdwg.mxu0
        %vm549 = vcmask 64512
        %550 = vst.msk [vmem:[%s354] sm:$0xff] %vm549, %v544
        %v551 = vld [vmem:[%s5] sm:$0xf]
        %v552 = vld [vmem:[%s5 + $0x4] sm:$0x3]
        %v553 = vld [vmem:[%s5 + $0x8] sm:$0xf]
        %v554 = vld [vmem:[%s5 + $0xc] sm:$0x3]
        %v555 = vld [vmem:[%s5 + $0x10] sm:$0xf]
        %v556 = vld [vmem:[%s5 + $0x14] sm:$0x3]
        %v557 = vld [vmem:[%s5 + $0x18] sm:$0xf]
        %v558 = vld [vmem:[%s5 + $0x1c] sm:$0x3]
        %v559 = vld [vmem:[%s6] sm:$0xff]
        %v560 = vld [vmem:[%s6 + $0x8] sm:$0xf]
        %v561 = vld [vmem:[%s6 + $0x10] sm:$0xff]
        %v562 = vld [vmem:[%s6 + $0x18] sm:$0xf]
        %v563 = vld [vmem:[%s6 + $0x20] sm:$0xff]
        %v564 = vld [vmem:[%s6 + $0x28] sm:$0xf]
        %v565 = vld [vmem:[%s6 + $0x30] sm:$0xff]
        %v566 = vld [vmem:[%s6 + $0x38] sm:$0xf]
        %568 = vset.pattern.permute.xlu0 0
        %569 = vperm.xlu0 %568, %v559
        %v570 = vpop.permute.xlu0 %569
        %573 = vset.pattern.permute.xlu0 0
        %574 = vperm.xlu0 %573, %v560
        %v575 = vpop.permute.xlu0 %574
        %578 = vset.pattern.permute.xlu0 0
        %579 = vperm.xlu0 %578, %v561
        %v580 = vpop.permute.xlu0 %579
        %583 = vset.pattern.permute.xlu0 0
        %584 = vperm.xlu0 %583, %v562
        %v585 = vpop.permute.xlu0 %584
        %588 = vset.pattern.permute.xlu0 0
        %589 = vperm.xlu0 %588, %v563
        %v590 = vpop.permute.xlu0 %589
        %593 = vset.pattern.permute.xlu0 0
        %594 = vperm.xlu0 %593, %v564
        %v595 = vpop.permute.xlu0 %594
        %598 = vset.pattern.permute.xlu0 0
        %599 = vperm.xlu0 %598, %v565
        %v600 = vpop.permute.xlu0 %599
        %603 = vset.pattern.permute.xlu0 0
        %604 = vperm.xlu0 %603, %v566
        %v605 = vpop.permute.xlu0 %604
        %v609 = vunpack.c.l.b16 %v551
        %v610 = vunpack.c.l.b16 %v552
        %v611 = vpack.c.b16 %v610, %v609
        %612 = vrot.lane.b32.xlu0 %v439, 84
        %v613 = vpop.permute.xlu0 %612
        %vm614 = vcmask 97280
        %v616 = vsel %vm614, %v611, 0
        %v619 = vsel %vm614, %v613, 0
        %621 = vmatprep.subr.bf16.mxu0 0
        %622 = vmatpush1.bf16.xpose.msra.mxu0 %v619
        %623 = vmatprep.subr.bf16.mxu0 0
        %624 = vmatpush1.bf16.xpose.msra.mxu0 0
        %625 = vmatprep.subr.bf16.mxu0 0
        %626 = vmatpush1.bf16.xpose.msra.mxu0 0
        %627 = vmatprep.subr.bf16.mxu0 0
        %628 = vmatpush1.bf16.xpose.msra.mxu0 0
        %629 = vmatprep.subr.bf16.mxu0 0
        %630 = vmatpush1.bf16.xpose.msra.mxu0 0
        %631 = vmatprep.subr.bf16.mxu0 0
        %632 = vmatpush1.bf16.xpose.msra.mxu0 0
        %633 = vmatprep.subr.bf16.mxu0 0
        %634 = vmatpush1.bf16.xpose.msra.mxu0 0
        %635 = vmatprep.subr.bf16.mxu0 0
        %636 = vmatpush1.bf16.xpose.msra.mxu0 0
        %637 = vmatprep.subr.bf16.mxu0 0
        %638 = vmatpush1.bf16.xpose.msra.mxu0 0
        %639 = vmatprep.subr.bf16.mxu0 0
        %640 = vmatpush1.bf16.xpose.msra.mxu0 0
        %641 = vmatprep.subr.bf16.mxu0 0
        %642 = vmatpush1.bf16.xpose.msra.mxu0 0
        %643 = vmatprep.subr.bf16.mxu0 0
        %644 = vmatpush1.bf16.xpose.msra.mxu0 0
        %645 = vmatprep.subr.bf16.mxu0 0
        %646 = vmatpush1.bf16.xpose.msra.mxu0 0
        %647 = vmatprep.subr.bf16.mxu0 0
        %648 = vmatpush1.bf16.xpose.msra.mxu0 0
        %649 = vmatprep.subr.bf16.mxu0 0
        %650 = vmatpush1.bf16.xpose.msra.mxu0 0
        %651 = vmatprep.subr.bf16.mxu0 0
        %652 = vmatpush1.bf16.xpose.msra.mxu0 0
        %653 = vmatprep.mubr.bf16.mxu0 0
        %654 = vmatmul.mubr.bf16.gmra.mrb[0].mxu0 %v616
        %v655 = vpop.f32.mrb[0].mxu0
        %v656 = vadd.f32 %v570, %v655
        %v657 = vpop.f32.mrb[0].mxu0
        %v658 = vpop.f32.mrb[0].mxu0
        %v659 = vadd.f32 %v575, %v658
        %v660 = vpop.f32.mrb[0].mxu0
        %661 = vdwg.mxu0
        %v664 = vunpack.c.l.b16 %v553
        %v665 = vunpack.c.l.b16 %v554
        %v666 = vpack.c.b16 %v665, %v664
        %v668 = vsel %vm614, %v666, 0
        %670 = vmatprep.subr.bf16.mxu0 0
        %671 = vmatpush1.bf16.xpose.msra.mxu0 %v619
        %672 = vmatprep.subr.bf16.mxu0 0
        %673 = vmatpush1.bf16.xpose.msra.mxu0 0
        %674 = vmatprep.subr.bf16.mxu0 0
        %675 = vmatpush1.bf16.xpose.msra.mxu0 0
        %676 = vmatprep.subr.bf16.mxu0 0
        %677 = vmatpush1.bf16.xpose.msra.mxu0 0
        %678 = vmatprep.subr.bf16.mxu0 0
        %679 = vmatpush1.bf16.xpose.msra.mxu0 0
        %680 = vmatprep.subr.bf16.mxu0 0
        %681 = vmatpush1.bf16.xpose.msra.mxu0 0
        %682 = vmatprep.subr.bf16.mxu0 0
        %683 = vmatpush1.bf16.xpose.msra.mxu0 0
        %684 = vmatprep.subr.bf16.mxu0 0
        %685 = vmatpush1.bf16.xpose.msra.mxu0 0
        %686 = vmatprep.subr.bf16.mxu0 0
        %687 = vmatpush1.bf16.xpose.msra.mxu0 0
        %688 = vmatprep.subr.bf16.mxu0 0
        %689 = vmatpush1.bf16.xpose.msra.mxu0 0
        %690 = vmatprep.subr.bf16.mxu0 0
        %691 = vmatpush1.bf16.xpose.msra.mxu0 0
        %692 = vmatprep.subr.bf16.mxu0 0
        %693 = vmatpush1.bf16.xpose.msra.mxu0 0
        %694 = vmatprep.subr.bf16.mxu0 0
        %695 = vmatpush1.bf16.xpose.msra.mxu0 0
        %696 = vmatprep.subr.bf16.mxu0 0
        %697 = vmatpush1.bf16.xpose.msra.mxu0 0
        %698 = vmatprep.subr.bf16.mxu0 0
        %699 = vmatpush1.bf16.xpose.msra.mxu0 0
        %700 = vmatprep.subr.bf16.mxu0 0
        %701 = vmatpush1.bf16.xpose.msra.mxu0 0
        %702 = vmatprep.mubr.bf16.mxu0 0
        %703 = vmatmul.mubr.bf16.gmra.mrb[0].mxu0 %v668
        %v704 = vpop.f32.mrb[0].mxu0
        %v705 = vadd.f32 %v580, %v704
        %v706 = vpop.f32.mrb[0].mxu0
        %v707 = vpop.f32.mrb[0].mxu0
        %v708 = vadd.f32 %v585, %v707
        %v709 = vpop.f32.mrb[0].mxu0
        %710 = vdwg.mxu0
        %v713 = vunpack.c.l.b16 %v555
        %v714 = vunpack.c.l.b16 %v556
        %v715 = vpack.c.b16 %v714, %v713
        %v717 = vsel %vm614, %v715, 0
        %719 = vmatprep.subr.bf16.mxu0 0
        %720 = vmatpush1.bf16.xpose.msra.mxu0 %v619
        %721 = vmatprep.subr.bf16.mxu0 0
        %722 = vmatpush1.bf16.xpose.msra.mxu0 0
        %723 = vmatprep.subr.bf16.mxu0 0
        %724 = vmatpush1.bf16.xpose.msra.mxu0 0
        %725 = vmatprep.subr.bf16.mxu0 0
        %726 = vmatpush1.bf16.xpose.msra.mxu0 0
        %727 = vmatprep.subr.bf16.mxu0 0
        %728 = vmatpush1.bf16.xpose.msra.mxu0 0
        %729 = vmatprep.subr.bf16.mxu0 0
        %730 = vmatpush1.bf16.xpose.msra.mxu0 0
        %731 = vmatprep.subr.bf16.mxu0 0
        %732 = vmatpush1.bf16.xpose.msra.mxu0 0
        %733 = vmatprep.subr.bf16.mxu0 0
        %734 = vmatpush1.bf16.xpose.msra.mxu0 0
        %735 = vmatprep.subr.bf16.mxu0 0
        %736 = vmatpush1.bf16.xpose.msra.mxu0 0
        %737 = vmatprep.subr.bf16.mxu0 0
        %738 = vmatpush1.bf16.xpose.msra.mxu0 0
        %739 = vmatprep.subr.bf16.mxu0 0
        %740 = vmatpush1.bf16.xpose.msra.mxu0 0
        %741 = vmatprep.subr.bf16.mxu0 0
        %742 = vmatpush1.bf16.xpose.msra.mxu0 0
        %743 = vmatprep.subr.bf16.mxu0 0
        %744 = vmatpush1.bf16.xpose.msra.mxu0 0
        %745 = vmatprep.subr.bf16.mxu0 0
        %746 = vmatpush1.bf16.xpose.msra.mxu0 0
        %747 = vmatprep.subr.bf16.mxu0 0
        %748 = vmatpush1.bf16.xpose.msra.mxu0 0
        %749 = vmatprep.subr.bf16.mxu0 0
        %750 = vmatpush1.bf16.xpose.msra.mxu0 0
        %751 = vmatprep.mubr.bf16.mxu0 0
        %752 = vmatmul.mubr.bf16.gmra.mrb[0].mxu0 %v717
        %v753 = vpop.f32.mrb[0].mxu0
        %v754 = vadd.f32 %v590, %v753
        %v755 = vpop.f32.mrb[0].mxu0
        %v756 = vpop.f32.mrb[0].mxu0
        %v757 = vadd.f32 %v595, %v756
        %v758 = vpop.f32.mrb[0].mxu0
        %759 = vdwg.mxu0
        %v762 = vunpack.c.l.b16 %v557
        %v763 = vunpack.c.l.b16 %v558
        %v764 = vpack.c.b16 %v763, %v762
        %v766 = vsel %vm614, %v764, 0
        %768 = vmatprep.subr.bf16.mxu0 0
        %769 = vmatpush1.bf16.xpose.msra.mxu0 %v619
        %770 = vmatprep.subr.bf16.mxu0 0
        %771 = vmatpush1.bf16.xpose.msra.mxu0 0
        %772 = vmatprep.subr.bf16.mxu0 0
        %773 = vmatpush1.bf16.xpose.msra.mxu0 0
        %774 = vmatprep.subr.bf16.mxu0 0
        %775 = vmatpush1.bf16.xpose.msra.mxu0 0
        %776 = vmatprep.subr.bf16.mxu0 0
        %777 = vmatpush1.bf16.xpose.msra.mxu0 0
        %778 = vmatprep.subr.bf16.mxu0 0
        %779 = vmatpush1.bf16.xpose.msra.mxu0 0
        %780 = vmatprep.subr.bf16.mxu0 0
        %781 = vmatpush1.bf16.xpose.msra.mxu0 0
        %782 = vmatprep.subr.bf16.mxu0 0
        %783 = vmatpush1.bf16.xpose.msra.mxu0 0
        %784 = vmatprep.subr.bf16.mxu0 0
        %785 = vmatpush1.bf16.xpose.msra.mxu0 0
        %786 = vmatprep.subr.bf16.mxu0 0
        %787 = vmatpush1.bf16.xpose.msra.mxu0 0
        %788 = vmatprep.subr.bf16.mxu0 0
        %789 = vmatpush1.bf16.xpose.msra.mxu0 0
        %790 = vmatprep.subr.bf16.mxu0 0
        %791 = vmatpush1.bf16.xpose.msra.mxu0 0
        %792 = vmatprep.subr.bf16.mxu0 0
        %793 = vmatpush1.bf16.xpose.msra.mxu0 0
        %794 = vmatprep.subr.bf16.mxu0 0
        %795 = vmatpush1.bf16.xpose.msra.mxu0 0
        %796 = vmatprep.subr.bf16.mxu0 0
        %797 = vmatpush1.bf16.xpose.msra.mxu0 0
        %798 = vmatprep.subr.bf16.mxu0 0
        %799 = vmatpush1.bf16.xpose.msra.mxu0 0
        %800 = vmatprep.mubr.bf16.mxu0 0
        %801 = vmatmul.mubr.bf16.gmra.mrb[0].mxu0 %v766
        %v802 = vpop.f32.mrb[0].mxu0
        %v803 = vadd.f32 %v600, %v802
        %v804 = vpop.f32.mrb[0].mxu0
        %v805 = vpop.f32.mrb[0].mxu0
        %v806 = vadd.f32 %v605, %v805
        %v807 = vpop.f32.mrb[0].mxu0
        %808 = vdwg.mxu0
        %v809 = vpack.c.bf16 %v659, %v656
        %v810 = vpack.c.bf16 %v708, %v705
        %v811 = vpack.c.bf16 %v757, %v754
        %v812 = vpack.c.bf16 %v806, %v803
        %v813 = vld [vmem:[%s7] sm:$0x3]
        %v814 = vld [vmem:[%s8] sm:$0xf]
        %816 = vset.pattern.permute.xlu0 0
        %817 = vperm.xlu0 %816, %v814
        %v818 = vpop.permute.xlu0 %817
        %v821 = vsel %vm614, %v813, 0
        %823 = vmatprep.subr.bf16.mxu0 0
        %824 = vmatpush1.bf16.xpose.msra.mxu0 %v619
        %825 = vmatprep.subr.bf16.mxu0 0
        %826 = vmatpush1.bf16.xpose.msra.mxu0 0
        %827 = vmatprep.subr.bf16.mxu0 0
        %828 = vmatpush1.bf16.xpose.msra.mxu0 0
        %829 = vmatprep.subr.bf16.mxu0 0
        %830 = vmatpush1.bf16.xpose.msra.mxu0 0
        %831 = vmatprep.subr.bf16.mxu0 0
        %832 = vmatpush1.bf16.xpose.msra.mxu0 0
        %833 = vmatprep.subr.bf16.mxu0 0
        %834 = vmatpush1.bf16.xpose.msra.mxu0 0
        %835 = vmatprep.subr.bf16.mxu0 0
        %836 = vmatpush1.bf16.xpose.msra.mxu0 0
        %837 = vmatprep.subr.bf16.mxu0 0
        %838 = vmatpush1.bf16.xpose.msra.mxu0 0
        %839 = vmatprep.subr.bf16.mxu0 0
        %840 = vmatpush1.bf16.xpose.msra.mxu0 0
        %841 = vmatprep.subr.bf16.mxu0 0
        %842 = vmatpush1.bf16.xpose.msra.mxu0 0
        %843 = vmatprep.subr.bf16.mxu0 0
        %844 = vmatpush1.bf16.xpose.msra.mxu0 0
        %845 = vmatprep.subr.bf16.mxu0 0
        %846 = vmatpush1.bf16.xpose.msra.mxu0 0
        %847 = vmatprep.subr.bf16.mxu0 0
        %848 = vmatpush1.bf16.xpose.msra.mxu0 0
        %849 = vmatprep.subr.bf16.mxu0 0
        %850 = vmatpush1.bf16.xpose.msra.mxu0 0
        %851 = vmatprep.subr.bf16.mxu0 0
        %852 = vmatpush1.bf16.xpose.msra.mxu0 0
        %853 = vmatprep.subr.bf16.mxu0 0
        %854 = vmatpush1.bf16.xpose.msra.mxu0 0
        %855 = vmatprep.mubr.bf16.mxu0 0
        %856 = vmatmul.mubr.bf16.gmra.mrb[0].mxu0 %v821
        %v857 = vpop.f32.mrb[0].mxu0
        %v858 = vadd.f32 %v818, %v857
        %v859 = vpop.f32.mrb[0].mxu0
        %v860 = vpop.f32.mrb[0].mxu0
        %v861 = vpop.f32.mrb[0].mxu0
        %862 = vdwg.mxu0
        %v865 = vunpack.c.l.s4 1966171168
        %v866 = vunpack.c.0.s8 %v865
        %v867 = vlaneseq
        %v868 = vshrl.u32 %v867, 7
        %v869 = vsub.s32 %v866, %v868
        %v870 = vrot.slane %v858, %v869
        %v871 = vcombine.high %v870, %v870
        %v873 = vunpack.c.l.s4 1966171168
        %v874 = vunpack.c.0.s8 %v873
        %v875 = vlaneseq
        %v876 = vshrl.u32 %v875, 7
        %v877 = vsub.s32 %v874, %v876
        %v878 = vrot.slane %v870, %v877
        %v880 = vunpack.c.l.s4 1966171168
        %v881 = vunpack.c.0.s8 %v880
        %v882 = vlaneseq
        %v883 = vshrl.u32 %v882, 7
        %v884 = vsub.s32 %v881, %v883
        %v885 = vrot.slane %v871, %v884
        %v886 = vcombine.high %v878, %v878
        %v887 = vcombine.high %v885, %v885
        %v888 = vlaneseq
        %v889 = vshrl.u32 %v888, 7
        %v890 = vsub.s32 0, %v889
        %v891 = vrot.slane %v878, %v890
        %v892 = vlaneseq
        %v893 = vshrl.u32 %v892, 7
        %v894 = vsub.s32 0, %v893
        %v895 = vrot.slane %v885, %v894
        %v896 = vlaneseq
        %v897 = vshrl.u32 %v896, 7
        %v898 = vsub.s32 0, %v897
        %v899 = vrot.slane %v886, %v898
        %v900 = vlaneseq
        %v901 = vshrl.u32 %v900, 7
        %v902 = vsub.s32 0, %v901
        %v903 = vrot.slane %v887, %v902
        %908 = vrot.lane.b32.xlu0 %v439, 96
        %v909 = vpop.permute.xlu0 %908
        %v911 = vsel %vm614, %v909, 0
        %vm913 = vcmask 1045504
        %v915 = vsel %vm913, %v809, 0
        %917 = vmatprep.subr.bf16.mxu0 0
        %918 = vmatpush1.bf16.msra.mxu0 %v915
        %919 = vmatprep.subr.bf16.mxu0 0
        %920 = vmatpush1.bf16.msra.mxu0 0
        %921 = vmatprep.subr.bf16.mxu0 0
        %922 = vmatpush1.bf16.msra.mxu0 0
        %923 = vmatprep.subr.bf16.mxu0 0
        %924 = vmatpush1.bf16.msra.mxu0 0
        %925 = vmatprep.subr.bf16.mxu0 0
        %926 = vmatpush1.bf16.msra.mxu0 0
        %927 = vmatprep.subr.bf16.mxu0 0
        %928 = vmatpush1.bf16.msra.mxu0 0
        %929 = vmatprep.subr.bf16.mxu0 0
        %930 = vmatpush1.bf16.msra.mxu0 0
        %931 = vmatprep.subr.bf16.mxu0 0
        %932 = vmatpush1.bf16.msra.mxu0 0
        %933 = vmatprep.subr.bf16.mxu0 0
        %934 = vmatpush1.bf16.msra.mxu0 0
        %935 = vmatprep.subr.bf16.mxu0 0
        %936 = vmatpush1.bf16.msra.mxu0 0
        %937 = vmatprep.subr.bf16.mxu0 0
        %938 = vmatpush1.bf16.msra.mxu0 0
        %939 = vmatprep.subr.bf16.mxu0 0
        %940 = vmatpush1.bf16.msra.mxu0 0
        %941 = vmatprep.subr.bf16.mxu0 0
        %942 = vmatpush1.bf16.msra.mxu0 0
        %943 = vmatprep.subr.bf16.mxu0 0
        %944 = vmatpush1.bf16.msra.mxu0 0
        %945 = vmatprep.subr.bf16.mxu0 0
        %946 = vmatpush1.bf16.msra.mxu0 0
        %947 = vmatprep.subr.bf16.mxu0 0
        %948 = vmatpush1.bf16.msra.mxu0 0
        %949 = vmatprep.mubr.bf16.mxu0 0
        %950 = vmatmul.mubr.bf16.gmra.mrb[0].mxu0 %v911
        %v951 = vpop.f32.mrb[0].mxu0
        %v952 = vadd.f32 %v891, %v951
        %v953 = vpop.f32.mrb[0].mxu0
        %v954 = vpop.f32.mrb[0].mxu0
        %v955 = vpop.f32.mrb[0].mxu0
        %956 = vdwg.mxu0
        %v958 = vsel %vm913, %v810, 0
        %960 = vmatprep.subr.bf16.mxu0 0
        %961 = vmatpush1.bf16.msra.mxu0 %v958
        %962 = vmatprep.subr.bf16.mxu0 0
        %963 = vmatpush1.bf16.msra.mxu0 0
        %964 = vmatprep.subr.bf16.mxu0 0
        %965 = vmatpush1.bf16.msra.mxu0 0
        %966 = vmatprep.subr.bf16.mxu0 0
        %967 = vmatpush1.bf16.msra.mxu0 0
        %968 = vmatprep.subr.bf16.mxu0 0
        %969 = vmatpush1.bf16.msra.mxu0 0
        %970 = vmatprep.subr.bf16.mxu0 0
        %971 = vmatpush1.bf16.msra.mxu0 0
        %972 = vmatprep.subr.bf16.mxu0 0
        %973 = vmatpush1.bf16.msra.mxu0 0
        %974 = vmatprep.subr.bf16.mxu0 0
        %975 = vmatpush1.bf16.msra.mxu0 0
        %976 = vmatprep.subr.bf16.mxu0 0
        %977 = vmatpush1.bf16.msra.mxu0 0
        %978 = vmatprep.subr.bf16.mxu0 0
        %979 = vmatpush1.bf16.msra.mxu0 0
        %980 = vmatprep.subr.bf16.mxu0 0
        %981 = vmatpush1.bf16.msra.mxu0 0
        %982 = vmatprep.subr.bf16.mxu0 0
        %983 = vmatpush1.bf16.msra.mxu0 0
        %984 = vmatprep.subr.bf16.mxu0 0
        %985 = vmatpush1.bf16.msra.mxu0 0
        %986 = vmatprep.subr.bf16.mxu0 0
        %987 = vmatpush1.bf16.msra.mxu0 0
        %988 = vmatprep.subr.bf16.mxu0 0
        %989 = vmatpush1.bf16.msra.mxu0 0
        %990 = vmatprep.subr.bf16.mxu0 0
        %991 = vmatpush1.bf16.msra.mxu0 0
        %992 = vmatprep.mubr.bf16.mxu0 0
        %993 = vmatmul.mubr.bf16.gmra.mrb[0].mxu0 %v911
        %v994 = vpop.f32.mrb[0].mxu0
        %v995 = vadd.f32 %v895, %v994
        %v996 = vpop.f32.mrb[0].mxu0
        %v997 = vpop.f32.mrb[0].mxu0
        %v998 = vpop.f32.mrb[0].mxu0
        %999 = vdwg.mxu0
        %v1001 = vsel %vm913, %v811, 0
        %1003 = vmatprep.subr.bf16.mxu0 0
        %1004 = vmatpush1.bf16.msra.mxu0 %v1001
        %1005 = vmatprep.subr.bf16.mxu0 0
        %1006 = vmatpush1.bf16.msra.mxu0 0
        %1007 = vmatprep.subr.bf16.mxu0 0
        %1008 = vmatpush1.bf16.msra.mxu0 0
        %1009 = vmatprep.subr.bf16.mxu0 0
        %1010 = vmatpush1.bf16.msra.mxu0 0
        %1011 = vmatprep.subr.bf16.mxu0 0
        %1012 = vmatpush1.bf16.msra.mxu0 0
        %1013 = vmatprep.subr.bf16.mxu0 0
        %1014 = vmatpush1.bf16.msra.mxu0 0
        %1015 = vmatprep.subr.bf16.mxu0 0
        %1016 = vmatpush1.bf16.msra.mxu0 0
        %1017 = vmatprep.subr.bf16.mxu0 0
        %1018 = vmatpush1.bf16.msra.mxu0 0
        %1019 = vmatprep.subr.bf16.mxu0 0
        %1020 = vmatpush1.bf16.msra.mxu0 0
        %1021 = vmatprep.subr.bf16.mxu0 0
        %1022 = vmatpush1.bf16.msra.mxu0 0
        %1023 = vmatprep.subr.bf16.mxu0 0
        %1024 = vmatpush1.bf16.msra.mxu0 0
        %1025 = vmatprep.subr.bf16.mxu0 0
        %1026 = vmatpush1.bf16.msra.mxu0 0
        %1027 = vmatprep.subr.bf16.mxu0 0
        %1028 = vmatpush1.bf16.msra.mxu0 0
        %1029 = vmatprep.subr.bf16.mxu0 0
        %1030 = vmatpush1.bf16.msra.mxu0 0
        %1031 = vmatprep.subr.bf16.mxu0 0
        %1032 = vmatpush1.bf16.msra.mxu0 0
        %1033 = vmatprep.subr.bf16.mxu0 0
        %1034 = vmatpush1.bf16.msra.mxu0 0
        %1035 = vmatprep.mubr.bf16.mxu0 0
        %1036 = vmatmul.mubr.bf16.gmra.mrb[0].mxu0 %v911
        %v1037 = vpop.f32.mrb[0].mxu0
        %v1038 = vadd.f32 %v899, %v1037
        %v1039 = vpop.f32.mrb[0].mxu0
        %v1040 = vpop.f32.mrb[0].mxu0
        %v1041 = vpop.f32.mrb[0].mxu0
        %1042 = vdwg.mxu0
        %v1044 = vsel %vm913, %v812, 0
        %1046 = vmatprep.subr.bf16.mxu0 0
        %1047 = vmatpush1.bf16.msra.mxu0 %v1044
        %1048 = vmatprep.subr.bf16.mxu0 0
        %1049 = vmatpush1.bf16.msra.mxu0 0
        %1050 = vmatprep.subr.bf16.mxu0 0
        %1051 = vmatpush1.bf16.msra.mxu0 0
        %1052 = vmatprep.subr.bf16.mxu0 0
        %1053 = vmatpush1.bf16.msra.mxu0 0
        %1054 = vmatprep.subr.bf16.mxu0 0
        %1055 = vmatpush1.bf16.msra.mxu0 0
        %1056 = vmatprep.subr.bf16.mxu0 0
        %1057 = vmatpush1.bf16.msra.mxu0 0
        %1058 = vmatprep.subr.bf16.mxu0 0
        %1059 = vmatpush1.bf16.msra.mxu0 0
        %1060 = vmatprep.subr.bf16.mxu0 0
        %1061 = vmatpush1.bf16.msra.mxu0 0
        %1062 = vmatprep.subr.bf16.mxu0 0
        %1063 = vmatpush1.bf16.msra.mxu0 0
        %1064 = vmatprep.subr.bf16.mxu0 0
        %1065 = vmatpush1.bf16.msra.mxu0 0
        %1066 = vmatprep.subr.bf16.mxu0 0
        %1067 = vmatpush1.bf16.msra.mxu0 0
        %1068 = vmatprep.subr.bf16.mxu0 0
        %1069 = vmatpush1.bf16.msra.mxu0 0
        %1070 = vmatprep.subr.bf16.mxu0 0
        %1071 = vmatpush1.bf16.msra.mxu0 0
        %1072 = vmatprep.subr.bf16.mxu0 0
        %1073 = vmatpush1.bf16.msra.mxu0 0
        %1074 = vmatprep.subr.bf16.mxu0 0
        %1075 = vmatpush1.bf16.msra.mxu0 0
        %1076 = vmatprep.subr.bf16.mxu0 0
        %1077 = vmatpush1.bf16.msra.mxu0 0
        %1078 = vmatprep.mubr.bf16.mxu0 0
        %1079 = vmatmul.mubr.bf16.gmra.mrb[0].mxu0 %v911
        %v1080 = vpop.f32.mrb[0].mxu0
        %v1081 = vadd.f32 %v903, %v1080
        %v1082 = vpop.f32.mrb[0].mxu0
        %v1083 = vpop.f32.mrb[0].mxu0
        %v1084 = vpop.f32.mrb[0].mxu0
        %1085 = vdwg.mxu0
        %1086 = vst.msk [vmem:[%s361] sm:$0xff] %vm549, %v952
        %1087 = vst.msk [vmem:[%s361 + $0x8] sm:$0xff] %vm549, %v995
        %1088 = vst.msk [vmem:[%s361 + $0x10] sm:$0xff] %vm549, %v1038
        %1089 = vst.msk [vmem:[%s361 + $0x18] sm:$0xff] %vm549, %v1081
        %s1090 = sand.u32 %s230, 1
        %s1091 = scalar_lea.sflag [#allocation3], %s1090
        %s1092 = sand.u32 %s230, 1
        %s1093 = smul.addr %s1092, 8
        %s1094 = scalar_lea.vmem [#allocation2], %s1093
        %s1095 = sand.u32 %s256, 1
        %s1096 = scalar_lea.sflag [#allocation5], %s1095
        %s1097 = sand.u32 %s256, 1
        %s1098 = smul.addr %s1097, 32
        %s1099 = scalar_lea.vmem [#allocation4], %s1098
        // Predicated region
        $region57: #{tpu_custom_call.1} parent=55 // pred_check
          %p1100 = pneg %p240
        $region58: #{tpu_custom_call.1} parent=55 // pred_check_branch
          %1102 = sbr.rel (%p1100) target = $region60
        $region59: #{tpu_custom_call.1} parent=55 // pred_region
          %s1104 = ssub.s32 128, 128
          %1105 = vsyncadd %s1091, %s1104
          %s1106 = smul.addr %s28, 128
          %s1107 = scalar_lea.hbm %s9, %s1106
          %s1109 = sshll.u32 %s1094, 4
          %s1110 = int_to_ptr.vmem [resolvable:$true] %s1109
          %1112 = dma.vmem_to_hbm [thread:$0]  %s1110, 128, %s1107, %s1091
        $region60: #{tpu_custom_call.1} parent=55 // pred_fallthru
          _
        // Predicated region
        $region61: #{tpu_custom_call.1} parent=55 // pred_check
          %p1113 = pneg %p266
        $region62: #{tpu_custom_call.1} parent=55 // pred_check_branch
          %1115 = sbr.rel (%p1113) target = $region64
        $region63: #{tpu_custom_call.1} parent=55 // pred_region
          %s1117 = ssub.s32 512, 512
          %1118 = vsyncadd %s1096, %s1117
          %s1119 = smul.addr %s28, 4
          %s1120 = smul.addr %s1119, 128
          %s1121 = scalar_lea.hbm %s10, %s1120
          %s1122 = sshll.u32 %s1099, 4
          %s1123 = int_to_ptr.vmem [resolvable:$true] %s1122
          %1128 = dma.vmem_to_hbm [thread:$0]  %s1123, 512, %s1121, %s1096, 128, 128, 8
        $region64: #{tpu_custom_call.1} parent=55 // pred_fallthru
          _
      $region56: #{tpu_custom_call.1} parent=5 // pred_fallthru
        _
      %p1129 = scmp.le.s32.totalorder 2, %s23
      // Predicated region
      $region65: #{tpu_custom_call.1} parent=5 // pred_check
        %p1130 = pneg %p1129
      $region66: #{tpu_custom_call.1} parent=5 // pred_check_branch
        %1132 = sbr.rel (%p1130) target = $region68
      $region67: #{tpu_custom_call.1} parent=5 // pred_region
        %s1133 = ssub.s32 %s23, 2
        // Predicated region
        $region69: #{tpu_custom_call.1} parent=67 // pred_check
          %p1134 = pneg %p246
        $region70: #{tpu_custom_call.1} parent=67 // pred_check_branch
          %1136 = sbr.rel (%p1134) target = $region72
        $region71: #{tpu_custom_call.1} parent=67 // pred_region
          %s1137 = sand.u32 %s231, 1
          %s1138 = scalar_lea.sflag [#allocation3], %s1137
          %s1139 = sand.u32 %s231, 1
          %s1140 = smul.addr %s1139, 8
          %s1141 = scalar_lea.vmem [#allocation2], %s1140
          %1142 = dma.done %s1138, 128
        $region72: #{tpu_custom_call.1} parent=67 // pred_fallthru
          _
        // Predicated region
        $region73: #{tpu_custom_call.1} parent=67 // pred_check
          %p1143 = pneg %p272
        $region74: #{tpu_custom_call.1} parent=67 // pred_check_branch
          %1145 = sbr.rel (%p1143) target = $region76
        $region75: #{tpu_custom_call.1} parent=67 // pred_region
          %s1146 = sand.u32 %s257, 1
          %s1147 = scalar_lea.sflag [#allocation5], %s1146
          %s1148 = sand.u32 %s257, 1
          %s1149 = smul.addr %s1148, 32
          %s1150 = scalar_lea.vmem [#allocation4], %s1149
          %1151 = dma.done %s1147, 512
        $region76: #{tpu_custom_call.1} parent=67 // pred_fallthru
          _
      $region68: #{tpu_custom_call.1} parent=5 // pred_fallthru
        _
    $region6: #{tpu_custom_call.1} parent=1 // loop_footer
      %s27 = sadd.s32 1, %s23
    $region7: #{tpu_custom_call.1} parent=1 // loop_footer_branch
      %22 = sbr.rel target = $region3
    $region8: #{tpu_custom_call.1} parent=1 // loop_exit
      _
    %1152 = vsyncpa [#allocation3], 1
    %s1153 = scalar_lea.sflag [#allocation3], 1
    %1154 = vsyncpa %s1153, 1
    %1155 = vsyncpa [#allocation5], 1
    %s1156 = scalar_lea.sflag [#allocation5], 1
    %1157 = vsyncpa %s1156, 1

</llo_original>
